<compile_context>
chip_gen: v7x
topology: tpu7x:2x2x1
jax: 0.10.0
libtpu: 0.0.40
codegen_flags: <defaults>
</compile_context>

<pallas_src>
import functools

import jax
import jax.numpy as jnp
from jax.experimental import pallas as pl
from jax.experimental.pallas import tpu as pltpu

# Row indices inside the packed (8, W) parameter-row operand.
ROW_B0, ROW_R0, ROW_H0_INIT, ROW_B1, ROW_R1P1, ROW_BOUT = 0, 1, 2, 3, 4, 5


def _round_up(n, m):
    return ((n + m - 1) // m) * m


def _pad2d(a, rows, cols):
    return jnp.pad(a, ((0, rows - a.shape[0]), (0, cols - a.shape[1])))


def task_network2_kernel(x_ref, w_ih_ref, w_hh_ref, w_ho_ref, rows_ref,
                         out_ref, h0_state, *, h0_p, h1_p, n_out_p):
    """One timestep of TaskNetwork2.  grid = (batch_tiles, T); weights VMEM-resident."""
    t = pl.program_id(1)

    b0    = rows_ref[ROW_B0:ROW_B0 + 1, :h0_p]            # (1, H0) f32
    r0    = rows_ref[ROW_R0:ROW_R0 + 1, :h0_p]            # diag of recurrent layer 0
    h_ini = rows_ref[ROW_H0_INIT:ROW_H0_INIT + 1, :h0_p]  # initial recurrent state (zeros)
    b1    = rows_ref[ROW_B1:ROW_B1 + 1, :h1_p]
    r1p1  = rows_ref[ROW_R1P1:ROW_R1P1 + 1, :h1_p]        # 1 + r1_diag (precomputed)
    b_out = rows_ref[ROW_BOUT:ROW_BOUT + 1, :n_out_p]

    @pl.when(t == 0)
    def _():
        # fresh recurrent state at the start of each batch-tile's rollout
        h0_state[...] = jnp.broadcast_to(h_ini, h0_state.shape)

    x = x_ref[0]                                           # (bt, n_in_p), bf16

    # layer 0: h0 = sigmoid(x @ W_ih + b0 + h0_prev * diag(r0))
    rec0 = h0_state[...] * r0                              # VPU elementwise (diag recurrence)
    pre0 = (jnp.dot(x, w_ih_ref[...], preferred_element_type=jnp.float32)
            + b0 + rec0)
    h0 = jax.nn.sigmoid(pre0)                              # f32
    h0_state[...] = h0                                     # carry to next timestep

    # layer 1: p1 = h0 @ W_hh + b1 ; p1 *= (1 + diag(r1)) ; h1 = sigmoid(p1)
    pre1 = (jnp.dot(h0.astype(w_hh_ref.dtype), w_hh_ref[...],
                    preferred_element_type=jnp.float32) + b1)
    pre1 = pre1 * r1p1
    h1 = jax.nn.sigmoid(pre1)

    # output layer (lane-dense, unmasked vst)
    out = (jnp.dot(h1.astype(w_ho_ref.dtype), w_ho_ref[...],
                   preferred_element_type=jnp.float32) + b_out)
    out_ref[0] = out.astype(out_ref.dtype)


def prepare_params(params, matmul_dtype=jnp.bfloat16):
    """One-time prep: pad weights lane/sublane-dense, cast MXU operands to bf16,
    pack the six small row vectors into a single (8, W) f32 array."""
    (w_ih, b0, r0_diag, h0_prev, w_hh, b1, r1_diag, w_ho, b_out) = params
    n_in, h0 = w_ih.shape
    h1 = w_hh.shape[1]
    n_out = w_ho.shape[1]

    n_in_p = _round_up(n_in, 128)
    h0_p = _round_up(h0, 128)
    h1_p = _round_up(h1, 128)
    n_out_p = _round_up(n_out, 128)
    row_w = max(h0_p, h1_p, n_out_p)

    # zero-padded weight rows/cols block any sigmoid(0)=0.5 leakage from padded lanes
    w_ih_p = _pad2d(w_ih, n_in_p, h0_p).astype(matmul_dtype)
    w_hh_p = _pad2d(w_hh, h0_p, h1_p).astype(matmul_dtype)
    w_ho_p = _pad2d(w_ho, h1_p, n_out_p).astype(matmul_dtype)

    rows = jnp.zeros((8, row_w), jnp.float32)
    rows = rows.at[ROW_B0, :h0].set(b0[0])
    rows = rows.at[ROW_R0, :h0].set(r0_diag[0])
    rows = rows.at[ROW_H0_INIT, :h0].set(h0_prev[0])
    rows = rows.at[ROW_B1, :h1].set(b1[0])
    rows = rows.at[ROW_R1P1, :h1].set(1.0 + r1_diag[0])
    rows = rows.at[ROW_BOUT, :n_out].set(b_out[0])

    dims = dict(n_in=n_in, h0=h0, h1=h1, n_out=n_out,
                n_in_p=n_in_p, h0_p=h0_p, h1_p=h1_p, n_out_p=n_out_p)
    return dict(w_ih=w_ih_p, w_hh=w_hh_p, w_ho=w_ho_p, rows=rows, dims=dims)


def task_network2_rollout(xs, prep):
    """Run T recurrent steps in one gridded pallas_call.

    xs:  (T, B, n_in) float32
    out: (T, B, n_out) float32
    """
    d = prep["dims"]
    T, B, n_in = xs.shape
    assert n_in == d["n_in"]
    mm_dtype = prep["w_ih"].dtype

    # sublane-dense batch (16 rows for bf16 packing), lane-dense features
    Bp = _round_up(B, 16)
    if Bp > 128:
        Bp = _round_up(Bp, 128)
        bt = 128
    else:
        bt = Bp
    nb = Bp // bt

    xs_p = jnp.pad(xs, ((0, 0), (0, Bp - B), (0, d["n_in_p"] - n_in))).astype(mm_dtype)

    kernel = functools.partial(task_network2_kernel,
                               h0_p=d["h0_p"], h1_p=d["h1_p"], n_out_p=d["n_out_p"])

    out_p = pl.pallas_call(
        kernel,
        out_shape=jax.ShapeDtypeStruct((T, Bp, d["n_out_p"]), jnp.float32),
        grid_spec=pltpu.PrefetchScalarGridSpec(
            num_scalar_prefetch=0,
            grid=(nb, T),
            in_specs=[
                pl.BlockSpec((1, bt, d["n_in_p"]), lambda b, t: (t, b, 0)),  # stream x per step
                pl.BlockSpec(prep["w_ih"].shape, lambda b, t: (0, 0)),       # weights DMA'd once,
                pl.BlockSpec(prep["w_hh"].shape, lambda b, t: (0, 0)),       # stay VMEM-resident
                pl.BlockSpec(prep["w_ho"].shape, lambda b, t: (0, 0)),
                pl.BlockSpec(prep["rows"].shape, lambda b, t: (0, 0)),       # packed biases/diags
            ],
            out_specs=pl.BlockSpec((1, bt, d["n_out_p"]), lambda b, t: (t, b, 0)),
            scratch_shapes=[pltpu.VMEM((bt, d["h0_p"]), jnp.float32)],       # recurrent h0 state
        ),
        compiler_params=pltpu.CompilerParams(
            dimension_semantics=("parallel", "arbitrary")),
    )(xs_p, prep["w_ih"], prep["w_hh"], prep["w_ho"], prep["rows"])

    # drop padded batch rows and padded output lanes
    return out_p[:, :B, :d["n_out"]]


def task_network2_forward(x, prep):
    """Single forward step from fresh state (the module's forward() after __init__)."""
    return task_network2_rollout(x[None], prep)[0]


# ---------------------------------------------------------------------------
# Deterministic, CPPN-flavored parameter construction (glue, plain JAX).
# Mimics CPPNConnectionQuery.query: clamp |o| to 1, threshold, renormalize,
# scale by the magnitude multiplier, keep sign; below threshold -> 0.
# ---------------------------------------------------------------------------
def _cppn_weights(key, shape, threshold=0.3, multiplier=1.0):
    raw = jnp.tanh(jax.random.normal(key, shape, dtype=jnp.float32) * 1.5)
    sign = jnp.sign(raw)
    mag = jnp.clip(jnp.abs(raw), 0.0, 1.0)
    norm = (mag - threshold) / (1.0 - threshold)
    return jnp.where(mag > threshold, multiplier * norm * sign, 0.0).astype(jnp.float32)


def make_params(key, n_in, h0, h1, n_out, n_bias=1):
    ks = jax.random.split(key, 8)
    w_ih = _cppn_weights(ks[0], (n_in, h0))
    w_hh = _cppn_weights(ks[1], (h0, h1))
    w_ho = _cppn_weights(ks[2], (h1, n_out))
    b0 = _cppn_weights(ks[3], (n_bias, h0))
    b1 = _cppn_weights(ks[4], (n_bias, h1))
    b_out = _cppn_weights(ks[5], (n_bias, n_out))
    # recurrent connections are diagonal (each coord queried against itself):
    # store only the diagonal as a (1, H) row vector.
    r0_diag = _cppn_weights(ks[6], (1, h0))
    r1_diag = _cppn_weights(ks[7], (1, h1))
    # fresh recurrent state, as in __init__: zeros of hidden_bias_weights[0].shape
    h0_prev = jnp.zeros((n_bias, h0), dtype=jnp.float32)
    return (w_ih, b0, r0_diag, h0_prev, w_hh, b1, r1_diag, w_ho, b_out)


# ---------------------------------------------------------------------------
# Pure-JAX references.
# ---------------------------------------------------------------------------
def reference_rollout_f32(xs, params):
    """Mirrors the PyTorch forward exactly (dense diagonal recurrences, f32)."""
    (w_ih, b0, r0_diag, h0_prev, w_hh, b1, r1_diag, w_ho, b_out) = params
    r0 = jnp.diag(r0_diag[0])
    r1 = jnp.diag(r1_diag[0])
    T, B, _ = xs.shape
    h_state = jnp.broadcast_to(h0_prev, (B, h0_prev.shape[1]))
    outs = []
    for t in range(T):
        h0 = jax.nn.sigmoid(xs[t] @ w_ih + b0 + h_state @ r0)
        h_state = h0
        p1 = h0 @ w_hh + b1
        p1 = p1 + p1 @ r1
        h1 = jax.nn.sigmoid(p1)
        outs.append(h1 @ w_ho + b_out)
    return jnp.stack(outs)


def reference_rollout_bf16(xs, params):
    """Same math with bf16 MXU operands / f32 accumulation, matching the kernel's precision."""
    (w_ih, b0, r0_diag, h0_prev, w_hh, b1, r1_diag, w_ho, b_out) = params
    bf = jnp.bfloat16

    def mm(a, b):
        return jnp.dot(a.astype(bf), b.astype(bf), preferred_element_type=jnp.float32)

    T, B, _ = xs.shape
    h_state = jnp.broadcast_to(h0_prev, (B, h0_prev.shape[1])).astype(jnp.float32)
    outs = []
    for t in range(T):
        h0 = jax.nn.sigmoid(mm(xs[t], w_ih) + b0 + h_state * r0_diag)
        h_state = h0
        p1 = (mm(h0, w_hh) + b1) * (1.0 + r1_diag)
        h1 = jax.nn.sigmoid(p1)
        outs.append(mm(h1, w_ho) + b_out)
    return jnp.stack(outs)


if __name__ == "__main__":
    # Small shapes consistent with the module: 8 input coords, two hidden layers
    # of 32 coords, 16 output coords, batch of 2 input rows, rollout of 8 steps.
    B, T, N_IN, H0, H1, N_OUT = 2, 8, 8, 32, 32, 16

    key = jax.random.PRNGKey(0)
    k_x, k_p = jax.random.split(key)
    xs = jax.random.normal(k_x, (T, B, N_IN), dtype=jnp.float32)
    params = make_params(k_p, N_IN, H0, H1, N_OUT)
    prep = prepare_params(params)  # one-time pad/pack/bf16 cast (hoisted out of the call path)

    # fused T-step rollout: one pallas_call, weights DMA'd once
    outs = task_network2_rollout(xs, prep)
    outs = jax.block_until_ready(outs)

    # single forward step (module.forward() semantics from fresh state)
    out1 = task_network2_forward(xs[0], prep)
    out1 = jax.block_until_ready(out1)

    ref_bf16 = reference_rollout_bf16(xs, params)
    ref_f32 = reference_rollout_f32(xs, params)

    assert outs.shape == (T, B, N_OUT)
    assert out1.shape == (B, N_OUT)
    # exact-precision check (same bf16-operand / f32-accumulate math)
    assert jnp.allclose(outs, ref_bf16, atol=2e-3, rtol=2e-3), "mismatch vs bf16 reference"
    # semantic check against the pure-f32 PyTorch-equivalent forward
    assert jnp.allclose(outs, ref_f32, atol=6e-2, rtol=6e-2), "mismatch vs f32 reference"
    assert jnp.allclose(out1, outs[0], atol=1e-5, rtol=1e-5), "single-step vs rollout[0] mismatch"

    print("KERNEL_OK")
</pallas_src>

<mosaic_0001>
module attributes {stable_mosaic.version = 11 : i64} {
  func.func @task_network2_kernel(%arg0: i32, %arg1: i32, %arg2: memref<1x16x128xbf16, #tpu.memory_space<vmem>>, %arg3: memref<128x128xbf16, #tpu.memory_space<vmem>>, %arg4: memref<128x128xbf16, #tpu.memory_space<vmem>>, %arg5: memref<128x128xbf16, #tpu.memory_space<vmem>>, %arg6: memref<8x128xf32, #tpu.memory_space<vmem>>, %arg7: memref<1x16x128xf32, #tpu.memory_space<vmem>>, %arg8: memref<16x128xf32, #tpu.memory_space<vmem>>) attributes {dimension_semantics = [#tpu.dimension_semantics<parallel>, #tpu.dimension_semantics<arbitrary>], iteration_bounds = array<i64: 1, 8>, scalar_prefetch = 0 : i64, scratch_operands = 1 : i64, tpu.core_type = #tpu.core_type<tc>, window_params = [{transform_indices = @transform_0, window_bounds = array<i64: 1, 16, 128>}, {pipeline_mode = #tpu.pipeline_mode<synchronous>, transform_indices = @transform_1, window_bounds = array<i64: 128, 128>}, {pipeline_mode = #tpu.pipeline_mode<synchronous>, transform_indices = @transform_2, window_bounds = array<i64: 128, 128>}, {pipeline_mode = #tpu.pipeline_mode<synchronous>, transform_indices = @transform_3, window_bounds = array<i64: 128, 128>}, {pipeline_mode = #tpu.pipeline_mode<synchronous>, transform_indices = @transform_4, window_bounds = array<i64: 8, 128>}, {transform_indices = @transform_5, window_bounds = array<i64: 1, 16, 128>}]} {
    %c0 = arith.constant 0 : index
    %c0_0 = arith.constant 0 : index
    %0 = vector.load %arg6[%c0, %c0_0] : memref<8x128xf32, #tpu.memory_space<vmem>>, vector<1x128xf32>
    %c1 = arith.constant 1 : index
    %c0_1 = arith.constant 0 : index
    %1 = vector.load %arg6[%c1, %c0_1] : memref<8x128xf32, #tpu.memory_space<vmem>>, vector<1x128xf32>
    %c2 = arith.constant 2 : index
    %c0_2 = arith.constant 0 : index
    %2 = vector.load %arg6[%c2, %c0_2] : memref<8x128xf32, #tpu.memory_space<vmem>>, vector<1x128xf32>
    %c3 = arith.constant 3 : index
    %c0_3 = arith.constant 0 : index
    %3 = vector.load %arg6[%c3, %c0_3] : memref<8x128xf32, #tpu.memory_space<vmem>>, vector<1x128xf32>
    %c4 = arith.constant 4 : index
    %c0_4 = arith.constant 0 : index
    %4 = vector.load %arg6[%c4, %c0_4] : memref<8x128xf32, #tpu.memory_space<vmem>>, vector<1x128xf32>
    %c5 = arith.constant 5 : index
    %c0_5 = arith.constant 0 : index
    %5 = vector.load %arg6[%c5, %c0_5] : memref<8x128xf32, #tpu.memory_space<vmem>>, vector<1x128xf32>
    %c0_i32 = arith.constant 0 : i32
    %6 = arith.cmpi eq, %arg1, %c0_i32 : i32
    %7 = arith.extui %6 : i1 to i32
    %c0_i32_6 = arith.constant 0 : i32
    %8 = arith.cmpi ne, %7, %c0_i32_6 : i32
    scf.if %8 {
      %45 = vector.shape_cast %2 : vector<1x128xf32> to vector<1x128xf32>
      %46 = vector.broadcast %45 : vector<1x128xf32> to vector<16x128xf32>
      %c0_27 = arith.constant 0 : index
      %c0_28 = arith.constant 0 : index
      %47 = vector.load %arg8[%c0_27, %c0_28] : memref<16x128xf32, #tpu.memory_space<vmem>>, vector<16x128xf32>
      tpu.vector_store %arg8[%c0_27, %c0_28], %46 {strides = array<i32>} : memref<16x128xf32, #tpu.memory_space<vmem>>, vector<16x128xf32>,
    } else {
    }
    %c0_7 = arith.constant 0 : index
    %c0_8 = arith.constant 0 : index
    %c0_9 = arith.constant 0 : index
    %9 = vector.load %arg2[%c0_7, %c0_8, %c0_9] : memref<1x16x128xbf16, #tpu.memory_space<vmem>>, vector<1x16x128xbf16>
    %10 = vector.shape_cast %9 : vector<1x16x128xbf16> to vector<16x128xbf16>
    %c0_10 = arith.constant 0 : index
    %c0_11 = arith.constant 0 : index
    %11 = vector.load %arg8[%c0_10, %c0_11] : memref<16x128xf32, #tpu.memory_space<vmem>>, vector<16x128xf32>
    %12 = vector.broadcast %1 : vector<1x128xf32> to vector<16x128xf32>
    %13 = arith.mulf %11, %12 : vector<16x128xf32>
    %c0_12 = arith.constant 0 : index
    %c0_13 = arith.constant 0 : index
    %14 = vector.load %arg3[%c0_12, %c0_13] : memref<128x128xbf16, #tpu.memory_space<vmem>>, vector<128x128xbf16>
    %cst = arith.constant dense<0.000000e+00> : vector<16x128xf32>
    %15 = tpu.matmul %10, %14, %cst {dimension_numbers = #tpu.dot_dimension_numbers<[1], [0], [0], [1], [0, 0, 1, 1], [], []>} : vector<16x128xbf16>, vector<128x128xbf16>, vector<16x128xf32> -> vector<16x128xf32>
    %16 = vector.broadcast %0 : vector<1x128xf32> to vector<16x128xf32>
    %17 = arith.addf %15, %16 : vector<16x128xf32>
    %18 = arith.addf %17, %13 : vector<16x128xf32>
    %19 = arith.negf %18 : vector<16x128xf32>
    %20 = math.exp %19 : vector<16x128xf32>
    %cst_14 = arith.constant 1.000000e+00 : f32
    %21 = vector.broadcast %cst_14 : f32 to vector<16x128xf32>
    %22 = arith.addf %21, %20 : vector<16x128xf32>
    %23 = arith.divf %21, %22 : vector<16x128xf32>
    %c0_15 = arith.constant 0 : index
    %c0_16 = arith.constant 0 : index
    %24 = vector.load %arg8[%c0_15, %c0_16] : memref<16x128xf32, #tpu.memory_space<vmem>>, vector<16x128xf32>
    tpu.vector_store %arg8[%c0_15, %c0_16], %23 {strides = array<i32>} : memref<16x128xf32, #tpu.memory_space<vmem>>, vector<16x128xf32>,
    %25 = arith.truncf %23 : vector<16x128xf32> to vector<16x128xbf16>
    %c0_17 = arith.constant 0 : index
    %c0_18 = arith.constant 0 : index
    %26 = vector.load %arg4[%c0_17, %c0_18] : memref<128x128xbf16, #tpu.memory_space<vmem>>, vector<128x128xbf16>
    %cst_19 = arith.constant dense<0.000000e+00> : vector<16x128xf32>
    %27 = tpu.matmul %25, %26, %cst_19 {dimension_numbers = #tpu.dot_dimension_numbers<[1], [0], [0], [1], [0, 0, 1, 1], [], []>} : vector<16x128xbf16>, vector<128x128xbf16>, vector<16x128xf32> -> vector<16x128xf32>
    %28 = vector.broadcast %3 : vector<1x128xf32> to vector<16x128xf32>
    %29 = arith.addf %27, %28 : vector<16x128xf32>
    %30 = vector.broadcast %4 : vector<1x128xf32> to vector<16x128xf32>
    %31 = arith.mulf %29, %30 : vector<16x128xf32>
    %32 = arith.negf %31 : vector<16x128xf32>
    %33 = math.exp %32 : vector<16x128xf32>
    %cst_20 = arith.constant 1.000000e+00 : f32
    %34 = vector.broadcast %cst_20 : f32 to vector<16x128xf32>
    %35 = arith.addf %34, %33 : vector<16x128xf32>
    %36 = arith.divf %34, %35 : vector<16x128xf32>
    %37 = arith.truncf %36 : vector<16x128xf32> to vector<16x128xbf16>
    %c0_21 = arith.constant 0 : index
    %c0_22 = arith.constant 0 : index
    %38 = vector.load %arg5[%c0_21, %c0_22] : memref<128x128xbf16, #tpu.memory_space<vmem>>, vector<128x128xbf16>
    %cst_23 = arith.constant dense<0.000000e+00> : vector<16x128xf32>
    %39 = tpu.matmul %37, %38, %cst_23 {dimension_numbers = #tpu.dot_dimension_numbers<[1], [0], [0], [1], [0, 0, 1, 1], [], []>} : vector<16x128xbf16>, vector<128x128xbf16>, vector<16x128xf32> -> vector<16x128xf32>
    %40 = vector.broadcast %5 : vector<1x128xf32> to vector<16x128xf32>
    %41 = arith.addf %39, %40 : vector<16x128xf32>
    %c0_24 = arith.constant 0 : index
    %c0_25 = arith.constant 0 : index
    %c0_26 = arith.constant 0 : index
    %42 = vector.load %arg7[%c0_24, %c0_25, %c0_26] : memref<1x16x128xf32, #tpu.memory_space<vmem>>, vector<1x16x128xf32>
    %43 = vector.shape_cast %42 : vector<1x16x128xf32> to vector<16x128xf32>
    %44 = vector.shape_cast %41 : vector<16x128xf32> to vector<1x16x128xf32>
    tpu.vector_store %arg7[%c0_24, %c0_25, %c0_26], %44 {strides = array<i32>} : memref<1x16x128xf32, #tpu.memory_space<vmem>>, vector<1x16x128xf32>,
    return
  }
  func.func @transform_0(%arg0: i32, %arg1: i32) -> (i32, i32, i32) {
    %c0_i32 = arith.constant 0 : i32
    %c0_i32_0 = arith.constant 0 : i32
    return %arg1, %arg0, %c0_i32 : i32, i32, i32
  }
  func.func @transform_1(%arg0: i32, %arg1: i32) -> (i32, i32) {
    %c0_i32 = arith.constant 0 : i32
    %c0_i32_0 = arith.constant 0 : i32
    %c0_i32_1 = arith.constant 0 : i32
    return %c0_i32, %c0_i32_0 : i32, i32
  }
  func.func @transform_2(%arg0: i32, %arg1: i32) -> (i32, i32) {
    %c0_i32 = arith.constant 0 : i32
    %c0_i32_0 = arith.constant 0 : i32
    %c0_i32_1 = arith.constant 0 : i32
    return %c0_i32, %c0_i32_0 : i32, i32
  }
  func.func @transform_3(%arg0: i32, %arg1: i32) -> (i32, i32) {
    %c0_i32 = arith.constant 0 : i32
    %c0_i32_0 = arith.constant 0 : i32
    %c0_i32_1 = arith.constant 0 : i32
    return %c0_i32, %c0_i32_0 : i32, i32
  }
  func.func @transform_4(%arg0: i32, %arg1: i32) -> (i32, i32) {
    %c0_i32 = arith.constant 0 : i32
    %c0_i32_0 = arith.constant 0 : i32
    %c0_i32_1 = arith.constant 0 : i32
    return %c0_i32, %c0_i32_0 : i32, i32
  }
  func.func @transform_5(%arg0: i32, %arg1: i32) -> (i32, i32, i32) {
    %c0_i32 = arith.constant 0 : i32
    %c0_i32_0 = arith.constant 0 : i32
    return %arg1, %arg0, %c0_i32 : i32, i32, i32
  }
}

</mosaic_0001>

<llo_original>
// kernel: tpu_custom_call.1
$region0: #{tpu_custom_call.1}
  #allocation0 [shape = 'u32[]', space=smem, size = 0x4, offset = 0x4, fixed_abs, tag = 'smem constant byte address 0x4 - core index']
  #allocation1 [shape = 'u32[144,128]{1,0:T(1,128)}', space=vmem, size = 0x12000, scoped, tag = 'internal scratch']
  #allocation2 [shape = 'f32[16,128]{1,0:T(8,128)}', space=vmem, size = 0x2000, scoped, tag = 'scratch operand']
  %s0 = inlined_call_operand.hbm [shape: bf16[8,16,128], index: 0, kind: input, shape index: {}]
  %s1 = inlined_call_operand.hbm [shape: bf16[128,128], index: 1, kind: input, shape index: {}]
  %s2 = inlined_call_operand.hbm [shape: bf16[128,128], index: 2, kind: input, shape index: {}]
  %s3 = inlined_call_operand.hbm [shape: bf16[128,128], index: 3, kind: input, shape index: {}]
  %s4 = inlined_call_operand.vmem [shape: f32[8,128], index: 4, kind: input, shape index: {}]
  %s5 = inlined_call_operand.hbm [shape: f32[8,16,128], index: 5, kind: output, shape index: {}]
  %s6 = sld [smem:[#allocation0]]
  $region73: #{tpu_custom_call.1} parent=0
    _
  %s8 = ssub.s32 1, %s6
  %s9 = scalar_select 0, %s8, %s6
  $region1: #{tpu_custom_call.1} parent=0
    #allocation3 [shape = 'u8[8192]{0}', space=vmem, size = 0x2000, scoped, tag = 'input window, operand 0']
    #allocation4 [shape = 's32[2]{0}', space=sflag, size = 0x8, scoped, tag = 'scoped memory for tpu_custom_call.1']
    #allocation5 [shape = 's32[2]{0}', space=sflag, size = 0x8, scoped, tag = 'scoped memory for tpu_custom_call.1']
    #allocation6 [shape = 'u8[32768]{0}', space=vmem, size = 0x8000, scoped, tag = 'input window, operand 1, single buffered']
    #allocation7 [shape = 's32[1]{0}', space=sflag, size = 0x4, scoped, tag = 'scoped memory for tpu_custom_call.1']
    #allocation8 [shape = 'u8[32768]{0}', space=vmem, size = 0x8000, scoped, tag = 'input window, operand 2, single buffered']
    #allocation9 [shape = 'u8[32768]{0}', space=vmem, size = 0x8000, scoped, tag = 'input window, operand 3, single buffered']
    #allocation10 [shape = 's32[1]{0}', space=sflag, size = 0x4, scoped, tag = 'scoped memory for tpu_custom_call.1']
    #allocation11 [shape = 'u8[16384]{0}', space=vmem, size = 0x4000, scoped, tag = 'output window, operand 0']
    %10 = vsyncpa [#allocation4], 0
    %s11 = scalar_lea.sflag [#allocation4], 1
    %12 = vsyncpa %s11, 0
    %13 = vsyncpa [#allocation7], 0
    %14 = vsyncpa [#allocation10], 0
    %15 = vsyncpa [#allocation5], 0
    %s16 = scalar_lea.sflag [#allocation5], 1
    %17 = vsyncpa %s16, 0
    loop: start=0, step=1, limit=10
    $region2: #{tpu_custom_call.1} parent=1 // loop_pre_header
      _
    $region3: #{tpu_custom_call.1} parent=1 // loop_header
      %s19 = sphi 0, %s23
      %p20 = scmp.ge.s32.totalorder %s19, 10
      %s26 = sphi 0, %s38
      %s27 = sphi 0, %s34
      %s28 = sphi 0, %s26
      %s29 = sphi 0, %s27
      %s30 = sphi 0, %s28
      %s31 = sphi 0, %s29
      %s43 = sphi 0, %s45
      %s46 = sphi 0, %s43
      %s47 = sphi 0, %s46
      %s63 = sphi 0, %s47
      %s67 = sphi 0, %s67
      %s69 = sphi 0, %s67
      %s70 = sphi 0, %s69
      %s84 = sphi 0, %s70
      %s88 = sphi 0, %s88
      %s90 = sphi 0, %s88
      %s91 = sphi 0, %s90
      %s105 = sphi 0, %s91
      %s109 = sphi 0, %s109
      %s111 = sphi 0, %s109
      %s112 = sphi 0, %s111
      %s126 = sphi 0, %s112
      %s130 = sphi 0, %s130
      %s132 = sphi 0, %s130
      %s133 = sphi 0, %s132
      %s147 = sphi 0, %s133
      %s155 = sphi 0, %s157
      %s158 = sphi 0, %s155
      %s159 = sphi 0, %s158
      %s175 = sphi 0, %s159
    $region4: #{tpu_custom_call.1} parent=1 // loop_header_branch
      %22 = sbr.rel (%p20) target = $region8
    $region5: #{tpu_custom_call.1} parent=1 // loop_body
      %s24 = ssub.s32 %s19, 1
      %s25 = ssub.s32 %s19, 2
      %s32 = sadd.s32 1, %s27
      %p33 = scmp.ge.s32.totalorder %s32, 8
      %s34 = scalar_select %p33, 0, %s32
      %s35 = sadd.s32 1, %s26
      %s36 = scalar_select %p33, %s35, %s26
      %p37 = scmp.ge.s32.totalorder %s36, 1
      %s38 = scalar_select %p37, 0, %s36
      %s39 = ssub.s32 %s27, %s34
      %s40 = ssub.s32 %s26, %s38
      %s41 = sor.u32 %s39, %s40
      %p42 = scmp.eq.s32.totalorder %s41, 0
      %s44 = sadd.s32 %s43, 1
      %s45 = scalar_select %p42, %s43, %s44
      %p48 = pneg %p42
      %p49 = scmp.eq.s32.totalorder %s19, 7
      %p50 = por %p48, %p49
      %p51 = scmp.ne.s32.totalorder %s43, %s46
      %p52 = scmp.eq.s32.totalorder %s19, 0
      %p53 = por %p51, %p52
      %p54 = scmp.ne.s32.totalorder %s43, %s46
      %p55 = scmp.eq.s32.totalorder %s24, 7
      %p56 = por %p54, %p55
      %p57 = scmp.ne.s32.totalorder %s46, %s47
      %p58 = scmp.eq.s32.totalorder %s24, 0
      %p59 = por %p57, %p58
      %p60 = scmp.ne.s32.totalorder %s46, %s47
      %p61 = scmp.eq.s32.totalorder %s25, 7
      %p62 = por %p60, %p61
      %p64 = scmp.ne.s32.totalorder %s47, %s63
      %p65 = scmp.eq.s32.totalorder %s25, 0
      %p66 = por %p64, %p65
      %s68 = sadd.s32 %s67, 1
      %p71 = scmp.eq.s32.totalorder %s19, 7
      %p72 = scmp.ne.s32.totalorder %s67, %s69
      %p73 = scmp.eq.s32.totalorder %s19, 0
      %p74 = por %p72, %p73
      %p75 = scmp.ne.s32.totalorder %s67, %s69
      %p76 = scmp.eq.s32.totalorder %s24, 7
      %p77 = por %p75, %p76
      %p78 = scmp.ne.s32.totalorder %s69, %s70
      %p79 = scmp.eq.s32.totalorder %s24, 0
      %p80 = por %p78, %p79
      %p81 = scmp.ne.s32.totalorder %s69, %s70
      %p82 = scmp.eq.s32.totalorder %s25, 7
      %p83 = por %p81, %p82
      %p85 = scmp.ne.s32.totalorder %s70, %s84
      %p86 = scmp.eq.s32.totalorder %s25, 0
      %p87 = por %p85, %p86
      %s89 = sadd.s32 %s88, 1
      %p92 = scmp.eq.s32.totalorder %s19, 7
      %p93 = scmp.ne.s32.totalorder %s88, %s90
      %p94 = scmp.eq.s32.totalorder %s19, 0
      %p95 = por %p93, %p94
      %p96 = scmp.ne.s32.totalorder %s88, %s90
      %p97 = scmp.eq.s32.totalorder %s24, 7
      %p98 = por %p96, %p97
      %p99 = scmp.ne.s32.totalorder %s90, %s91
      %p100 = scmp.eq.s32.totalorder %s24, 0
      %p101 = por %p99, %p100
      %p102 = scmp.ne.s32.totalorder %s90, %s91
      %p103 = scmp.eq.s32.totalorder %s25, 7
      %p104 = por %p102, %p103
      %p106 = scmp.ne.s32.totalorder %s91, %s105
      %p107 = scmp.eq.s32.totalorder %s25, 0
      %p108 = por %p106, %p107
      %s110 = sadd.s32 %s109, 1
      %p113 = scmp.eq.s32.totalorder %s19, 7
      %p114 = scmp.ne.s32.totalorder %s109, %s111
      %p115 = scmp.eq.s32.totalorder %s19, 0
      %p116 = por %p114, %p115
      %p117 = scmp.ne.s32.totalorder %s109, %s111
      %p118 = scmp.eq.s32.totalorder %s24, 7
      %p119 = por %p117, %p118
      %p120 = scmp.ne.s32.totalorder %s111, %s112
      %p121 = scmp.eq.s32.totalorder %s24, 0
      %p122 = por %p120, %p121
      %p123 = scmp.ne.s32.totalorder %s111, %s112
      %p124 = scmp.eq.s32.totalorder %s25, 7
      %p125 = por %p123, %p124
      %p127 = scmp.ne.s32.totalorder %s112, %s126
      %p128 = scmp.eq.s32.totalorder %s25, 0
      %p129 = por %p127, %p128
      %s131 = sadd.s32 %s130, 1
      %p134 = scmp.eq.s32.totalorder %s19, 7
      %p135 = scmp.ne.s32.totalorder %s130, %s132
      %p136 = scmp.eq.s32.totalorder %s19, 0
      %p137 = por %p135, %p136
      %p138 = scmp.ne.s32.totalorder %s130, %s132
      %p139 = scmp.eq.s32.totalorder %s24, 7
      %p140 = por %p138, %p139
      %p141 = scmp.ne.s32.totalorder %s132, %s133
      %p142 = scmp.eq.s32.totalorder %s24, 0
      %p143 = por %p141, %p142
      %p144 = scmp.ne.s32.totalorder %s132, %s133
      %p145 = scmp.eq.s32.totalorder %s25, 7
      %p146 = por %p144, %p145
      %p148 = scmp.ne.s32.totalorder %s133, %s147
      %p149 = scmp.eq.s32.totalorder %s25, 0
      %p150 = por %p148, %p149
      %s151 = ssub.s32 %s27, %s34
      %s152 = ssub.s32 %s26, %s38
      %s153 = sor.u32 %s151, %s152
      %p154 = scmp.eq.s32.totalorder %s153, 0
      %s156 = sadd.s32 %s155, 1
      %s157 = scalar_select %p154, %s155, %s156
      %p160 = pneg %p154
      %p161 = scmp.eq.s32.totalorder %s19, 7
      %p162 = por %p160, %p161
      %p163 = scmp.ne.s32.totalorder %s155, %s158
      %p164 = scmp.eq.s32.totalorder %s19, 0
      %p165 = por %p163, %p164
      %p166 = scmp.ne.s32.totalorder %s155, %s158
      %p167 = scmp.eq.s32.totalorder %s24, 7
      %p168 = por %p166, %p167
      %p169 = scmp.ne.s32.totalorder %s158, %s159
      %p170 = scmp.eq.s32.totalorder %s24, 0
      %p171 = por %p169, %p170
      %p172 = scmp.ne.s32.totalorder %s158, %s159
      %p173 = scmp.eq.s32.totalorder %s25, 7
      %p174 = por %p172, %p173
      %p176 = scmp.ne.s32.totalorder %s159, %s175
      %p177 = scmp.eq.s32.totalorder %s25, 0
      %p178 = por %p176, %p177
      %p179 = scmp.le.s32.totalorder 1, %s19
      %p180 = scmp.lt.s32.totalorder %s19, 9
      %p181 = pnand %p179, %p180
      %p182 = pneg %p181
      // Predicated region
      $region9: #{tpu_custom_call.1} parent=5 // pred_check
        _
      $region10: #{tpu_custom_call.1} parent=5 // pred_check_branch
        %184 = sbr.rel (%p181) target = $region12
      $region11: #{tpu_custom_call.1} parent=5 // pred_region
        %s185 = ssub.s32 %s19, 1
        // Predicated region
        $region13: #{tpu_custom_call.1} parent=11 // pred_check
          %p186 = pneg %p80
        $region14: #{tpu_custom_call.1} parent=11 // pred_check_branch
          %188 = sbr.rel (%p186) target = $region16
        $region15: #{tpu_custom_call.1} parent=11 // pred_region
          %s190 = ssub.s32 1024, 1024
          %191 = vsyncadd [#allocation7], %s190
          %s192 = sshll.u32 [#allocation6], 4
          %s193 = int_to_ptr.vmem [resolvable:$true] %s192
          %198 = dma.hbm_to_vmem [thread:$0]  %s1, 1024, %s193, [#allocation7], 64, 64, 4
        $region16: #{tpu_custom_call.1} parent=11 // pred_fallthru
          _
        // Predicated region
        $region17: #{tpu_custom_call.1} parent=11 // pred_check
          %p199 = pneg %p101
        $region18: #{tpu_custom_call.1} parent=11 // pred_check_branch
          %201 = sbr.rel (%p199) target = $region20
        $region19: #{tpu_custom_call.1} parent=11 // pred_region
          %s203 = ssub.s32 1024, 1024
          %204 = vsyncadd [#allocation7], %s203
          %s205 = sshll.u32 [#allocation8], 4
          %s206 = int_to_ptr.vmem [resolvable:$true] %s205
          %211 = dma.hbm_to_vmem [thread:$0]  %s2, 1024, %s206, [#allocation7], 64, 64, 4
        $region20: #{tpu_custom_call.1} parent=11 // pred_fallthru
          _
        // Predicated region
        $region21: #{tpu_custom_call.1} parent=11 // pred_check
          %p212 = pneg %p122
        $region22: #{tpu_custom_call.1} parent=11 // pred_check_branch
          %214 = sbr.rel (%p212) target = $region24
        $region23: #{tpu_custom_call.1} parent=11 // pred_region
          %s216 = ssub.s32 1024, 1024
          %217 = vsyncadd [#allocation10], %s216
          %s218 = sshll.u32 [#allocation9], 4
          %s219 = int_to_ptr.vmem [resolvable:$true] %s218
          %224 = dma.hbm_to_vmem [thread:$0]  %s3, 1024, %s219, [#allocation10], 64, 64, 4
        $region24: #{tpu_custom_call.1} parent=11 // pred_fallthru
          _
        // Predicated region
        $region25: #{tpu_custom_call.1} parent=11 // pred_check
          %p225 = pneg %p143
        $region26: #{tpu_custom_call.1} parent=11 // pred_check_branch
          %227 = sbr.rel (%p225) target = $region28
        $region27: #{tpu_custom_call.1} parent=11 // pred_region
          _
        $region28: #{tpu_custom_call.1} parent=11 // pred_fallthru
          _
      $region12: #{tpu_custom_call.1} parent=5 // pred_fallthru
        _
      %p228 = scmp.lt.s32.totalorder %s19, 8
      // Predicated region
      $region29: #{tpu_custom_call.1} parent=5 // pred_check
        %p229 = pneg %p228
      $region30: #{tpu_custom_call.1} parent=5 // pred_check_branch
        %231 = sbr.rel (%p229) target = $region32
      $region31: #{tpu_custom_call.1} parent=5 // pred_region
        // Predicated region
        $region33: #{tpu_custom_call.1} parent=31 // pred_check
          %p232 = pneg %p53
        $region34: #{tpu_custom_call.1} parent=31 // pred_check_branch
          %234 = sbr.rel (%p232) target = $region36
        $region35: #{tpu_custom_call.1} parent=31 // pred_region
          %s235 = sand.u32 %s43, 1
          %s236 = scalar_lea.sflag [#allocation4], %s235
          %s237 = sand.u32 %s43, 1
          %s238 = smul.addr %s237, 8
          %s239 = scalar_lea.vmem [#allocation3], %s238
          %s240 = smul.u32 2, %s26
          %s242 = ssub.s32 128, 128
          %243 = vsyncadd %s236, %s242
          %s244 = smul.addr %s27, 2
          %s245 = sadd.s32 %s240, %s244
          %s246 = smul.addr %s245, 64
          %s247 = scalar_lea.hbm %s0, %s246
          %s248 = sshll.u32 %s239, 4
          %s249 = int_to_ptr.vmem [resolvable:$true] %s248
          %254 = dma.hbm_to_vmem [thread:$0]  %s247, 128, %s249, %s236, 64, 64, 4
        $region36: #{tpu_custom_call.1} parent=31 // pred_fallthru
          _
      $region32: #{tpu_custom_call.1} parent=5 // pred_fallthru
        _
      %p255 = scmp.le.s32.totalorder 1, %s19
      %p256 = scmp.lt.s32.totalorder %s19, 9
      %p257 = pnand %p255, %p256
      %p258 = pneg %p257
      // Predicated region
      $region37: #{tpu_custom_call.1} parent=5 // pred_check
        _
      $region38: #{tpu_custom_call.1} parent=5 // pred_check_branch
        %260 = sbr.rel (%p257) target = $region40
      $region39: #{tpu_custom_call.1} parent=5 // pred_region
        %s261 = ssub.s32 %s19, 1
        %s262 = sand.u32 %s46, 1
        %s263 = scalar_lea.sflag [#allocation4], %s262
        %s264 = sand.u32 %s46, 1
        %s265 = smul.addr %s264, 8
        %s266 = scalar_lea.vmem [#allocation3], %s265
        // Predicated region
        $region41: #{tpu_custom_call.1} parent=39 // pred_check
          %p267 = pneg %p59
        $region42: #{tpu_custom_call.1} parent=39 // pred_check_branch
          %269 = sbr.rel (%p267) target = $region44
        $region43: #{tpu_custom_call.1} parent=39 // pred_region
          %270 = dma.done %s263, 128
        $region44: #{tpu_custom_call.1} parent=39 // pred_fallthru
          _
        // Predicated region
        $region45: #{tpu_custom_call.1} parent=39 // pred_check
          %p271 = pneg %p80
        $region46: #{tpu_custom_call.1} parent=39 // pred_check_branch
          %273 = sbr.rel (%p271) target = $region48
        $region47: #{tpu_custom_call.1} parent=39 // pred_region
          %274 = dma.done [#allocation7], 1024
        $region48: #{tpu_custom_call.1} parent=39 // pred_fallthru
          _
        // Predicated region
        $region49: #{tpu_custom_call.1} parent=39 // pred_check
          %p275 = pneg %p101
        $region50: #{tpu_custom_call.1} parent=39 // pred_check_branch
          %277 = sbr.rel (%p275) target = $region52
        $region51: #{tpu_custom_call.1} parent=39 // pred_region
          %278 = dma.done [#allocation7], 1024
        $region52: #{tpu_custom_call.1} parent=39 // pred_fallthru
          _
        // Predicated region
        $region53: #{tpu_custom_call.1} parent=39 // pred_check
          %p279 = pneg %p122
        $region54: #{tpu_custom_call.1} parent=39 // pred_check_branch
          %281 = sbr.rel (%p279) target = $region56
        $region55: #{tpu_custom_call.1} parent=39 // pred_region
          %282 = dma.done [#allocation10], 1024
        $region56: #{tpu_custom_call.1} parent=39 // pred_fallthru
          _
        %s283 = sand.u32 %s46, 1
        %s284 = scalar_lea.sflag [#allocation4], %s283
        %s285 = sand.u32 %s46, 1
        %s286 = smul.addr %s285, 8
        %s287 = scalar_lea.vmem [#allocation3], %s286
        %p288 = pneg %p59
        %p289 = pneg %p56
        %p290 = pneg %p80
        %p291 = pneg %p77
        %p292 = pneg %p101
        %p293 = pneg %p98
        %p294 = pneg %p122
        %p295 = pneg %p119
        %p296 = pneg %p143
        %p297 = pneg %p140
        %p298 = pneg %p171
        %p299 = pneg %p168
        %s300 = sand.u32 %s158, 1
        %s301 = scalar_lea.sflag [#allocation5], %s300
        %s302 = sand.u32 %s158, 1
        %s303 = smul.addr %s302, 16
        %s304 = scalar_lea.vmem [#allocation11], %s303
        %s305 = smul.u32 2, %s28
        %s306 = smul.u32 2, %s28
        %v308 = vld [vmem:[%s4] sm:$0x1]
        %v309 = vld [vmem:[%s4 + $0x1] sm:$0x1]
        %v310 = vld [vmem:[%s4 + $0x2] sm:$0x1]
        %v311 = vld [vmem:[%s4 + $0x3] sm:$0x1]
        %v312 = vld [vmem:[%s4 + $0x4] sm:$0x1]
        %v313 = vld [vmem:[%s4 + $0x5] sm:$0x1]
        %p314 = scmp.eq.s32.totalorder %s29, 0
        // Predicated region
        $region57: #{tpu_custom_call.1} parent=39 // pred_check
          %p315 = pneg %p314
        $region58: #{tpu_custom_call.1} parent=39 // pred_check_branch
          %317 = sbr.rel (%p315) target = $region60
        $region59: #{tpu_custom_call.1} parent=39 // pred_region
          %v318 = vlaneseq
          %v319 = vshrl.u32 %v318, 7
          %v320 = vsub.s32 0, %v319
          %v321 = vrot.slane %v310, %v320
          %322 = vst [vmem:[#allocation2] sm:$0xff] %v321
          %323 = vst [vmem:[#allocation2 + $0x8] sm:$0xff] %v321
        $region60: #{tpu_custom_call.1} parent=39 // pred_fallthru
          _
        %v324 = vld [vmem:[%s266] sm:$0xf]
        %v325 = vld [vmem:[%s266 + $0x4] sm:$0xf]
        %v326 = vld [vmem:[#allocation2] sm:$0xff]
        %v327 = vld [vmem:[#allocation2 + $0x8] sm:$0xff]
        %v328 = vlaneseq
        %v329 = vshrl.u32 %v328, 7
        %v330 = vsub.s32 0, %v329
        %v331 = vrot.slane %v309, %v330
        %v332 = vmul.f32 %v326, %v331
        %v333 = vmul.f32 %v327, %v331
        %v334 = vld [vmem:[#allocation6] sm:$0xf]
        %v335 = vld [vmem:[#allocation6 + $0x4] sm:$0xf]
        %v336 = vld [vmem:[#allocation6 + $0x8] sm:$0xf]
        %v337 = vld [vmem:[#allocation6 + $0xc] sm:$0xf]
        %v338 = vld [vmem:[#allocation6 + $0x10] sm:$0xf]
        %v339 = vld [vmem:[#allocation6 + $0x14] sm:$0xf]
        %v340 = vld [vmem:[#allocation6 + $0x18] sm:$0xf]
        %v341 = vld [vmem:[#allocation6 + $0x1c] sm:$0xf]
        %v342 = vld [vmem:[#allocation6 + $0x20] sm:$0xf]
        %v343 = vld [vmem:[#allocation6 + $0x24] sm:$0xf]
        %v344 = vld [vmem:[#allocation6 + $0x28] sm:$0xf]
        %v345 = vld [vmem:[#allocation6 + $0x2c] sm:$0xf]
        %v346 = vld [vmem:[#allocation6 + $0x30] sm:$0xf]
        %v347 = vld [vmem:[#allocation6 + $0x34] sm:$0xf]
        %v348 = vld [vmem:[#allocation6 + $0x38] sm:$0xf]
        %v349 = vld [vmem:[#allocation6 + $0x3c] sm:$0xf]
        %v350 = vlaneseq
        %v351 = vshrl.u32 %v350, 7
        %v352 = vsub.s32 0, %v351
        %v353 = vrot.slane %v308, %v352
        %v356 = vunpack.c.l.b16 %v324
        %v357 = vunpack.c.l.b16 %v325
        %v358 = vpack.c.b16 %v357, %v356
        %v376 = vunpack.c.l.b16 %v334
        %v377 = vunpack.c.l.b16 %v335
        %v378 = vunpack.c.l.b16 %v336
        %v379 = vunpack.c.l.b16 %v337
        %v380 = vunpack.c.l.b16 %v338
        %v381 = vunpack.c.l.b16 %v339
        %v382 = vunpack.c.l.b16 %v340
        %v383 = vunpack.c.l.b16 %v341
        %v384 = vunpack.c.l.b16 %v342
        %v385 = vunpack.c.l.b16 %v343
        %v386 = vunpack.c.l.b16 %v344
        %v387 = vunpack.c.l.b16 %v345
        %v388 = vunpack.c.l.b16 %v346
        %v389 = vunpack.c.l.b16 %v347
        %v390 = vunpack.c.l.b16 %v348
        %v391 = vunpack.c.l.b16 %v349
        %v392 = vpack.c.b16 %v377, %v376
        %v393 = vpack.c.b16 %v379, %v378
        %v394 = vpack.c.b16 %v381, %v380
        %v395 = vpack.c.b16 %v383, %v382
        %v396 = vpack.c.b16 %v385, %v384
        %v397 = vpack.c.b16 %v387, %v386
        %v398 = vpack.c.b16 %v389, %v388
        %v399 = vpack.c.b16 %v391, %v390
        %408 = vmatprep.subr.bf16.mxu0 0
        %409 = vmatpush1.bf16.msra.mxu0 %v392
        %410 = vmatprep.subr.bf16.mxu0 0
        %411 = vmatpush1.bf16.msra.mxu0 %v393
        %412 = vmatprep.subr.bf16.mxu0 0
        %413 = vmatpush1.bf16.msra.mxu0 %v394
        %414 = vmatprep.subr.bf16.mxu0 0
        %415 = vmatpush1.bf16.msra.mxu0 %v395
        %416 = vmatprep.subr.bf16.mxu0 0
        %417 = vmatpush1.bf16.msra.mxu0 %v396
        %418 = vmatprep.subr.bf16.mxu0 0
        %419 = vmatpush1.bf16.msra.mxu0 %v397
        %420 = vmatprep.subr.bf16.mxu0 0
        %421 = vmatpush1.bf16.msra.mxu0 %v398
        %422 = vmatprep.subr.bf16.mxu0 0
        %423 = vmatpush1.bf16.msra.mxu0 %v399
        %424 = vmatprep.subr.bf16.mxu0 0
        %425 = vmatpush1.bf16.msra.mxu0 0
        %426 = vmatprep.subr.bf16.mxu0 0
        %427 = vmatpush1.bf16.msra.mxu0 0
        %428 = vmatprep.subr.bf16.mxu0 0
        %429 = vmatpush1.bf16.msra.mxu0 0
        %430 = vmatprep.subr.bf16.mxu0 0
        %431 = vmatpush1.bf16.msra.mxu0 0
        %432 = vmatprep.subr.bf16.mxu0 0
        %433 = vmatpush1.bf16.msra.mxu0 0
        %434 = vmatprep.subr.bf16.mxu0 0
        %435 = vmatpush1.bf16.msra.mxu0 0
        %436 = vmatprep.subr.bf16.mxu0 0
        %437 = vmatpush1.bf16.msra.mxu0 0
        %438 = vmatprep.subr.bf16.mxu0 0
        %439 = vmatpush1.bf16.msra.mxu0 0
        %440 = vmatprep.mubr.bf16.mxu0 0
        %441 = vmatmul.mubr.bf16.gmra.mrb[0].mxu0 %v358
        %v442 = vpop.f32.mrb[0].mxu0
        %v443 = vadd.f32 %v353, %v442
        %v444 = vpop.f32.mrb[0].mxu0
        %v445 = vpop.f32.mrb[0].mxu0
        %v446 = vadd.f32 %v353, %v445
        %v447 = vpop.f32.mrb[0].mxu0
        %448 = vdwg.mxu0
        %v449 = vadd.f32 %v443, %v332
        %v450 = vadd.f32 %v446, %v333
        %v451 = vxor.u32 %v449, 2147483648
        %v452 = vxor.u32 %v450, 2147483648
        %v453 = vmul.f32 %v451, 1.442695
        %v454 = vpow.pop %v453
        %v455 = vmul.f32 %v452, 1.442695
        %v456 = vpow.pop %v455
        %v457 = vadd.f32 %v454, 1.0
        %v458 = vadd.f32 %v456, 1.0
        %v459 = vrcp.pop %v457
        %v460 = vmul.f32 1.0, %v459
        %v461 = vrcp.pop %v458
        %v462 = vmul.f32 1.0, %v461
        %463 = vst [vmem:[#allocation2] sm:$0xff] %v460
        %464 = vst [vmem:[#allocation2 + $0x8] sm:$0xff] %v462
        %v465 = vpack.c.bf16 %v462, %v460
        %v466 = vld [vmem:[#allocation8] sm:$0xf]
        %v467 = vld [vmem:[#allocation8 + $0x4] sm:$0xf]
        %v468 = vld [vmem:[#allocation8 + $0x8] sm:$0xf]
        %v469 = vld [vmem:[#allocation8 + $0xc] sm:$0xf]
        %v470 = vld [vmem:[#allocation8 + $0x10] sm:$0xf]
        %v471 = vld [vmem:[#allocation8 + $0x14] sm:$0xf]
        %v472 = vld [vmem:[#allocation8 + $0x18] sm:$0xf]
        %v473 = vld [vmem:[#allocation8 + $0x1c] sm:$0xf]
        %v474 = vld [vmem:[#allocation8 + $0x20] sm:$0xf]
        %v475 = vld [vmem:[#allocation8 + $0x24] sm:$0xf]
        %v476 = vld [vmem:[#allocation8 + $0x28] sm:$0xf]
        %v477 = vld [vmem:[#allocation8 + $0x2c] sm:$0xf]
        %v478 = vld [vmem:[#allocation8 + $0x30] sm:$0xf]
        %v479 = vld [vmem:[#allocation8 + $0x34] sm:$0xf]
        %v480 = vld [vmem:[#allocation8 + $0x38] sm:$0xf]
        %v481 = vld [vmem:[#allocation8 + $0x3c] sm:$0xf]
        %v482 = vlaneseq
        %v483 = vshrl.u32 %v482, 7
        %v484 = vsub.s32 0, %v483
        %v485 = vrot.slane %v311, %v484
        %v502 = vunpack.c.l.b16 %v466
        %v503 = vunpack.c.l.b16 %v467
        %v504 = vunpack.c.l.b16 %v468
        %v505 = vunpack.c.l.b16 %v469
        %v506 = vunpack.c.l.b16 %v470
        %v507 = vunpack.c.l.b16 %v471
        %v508 = vunpack.c.l.b16 %v472
        %v509 = vunpack.c.l.b16 %v473
        %v510 = vunpack.c.l.b16 %v474
        %v511 = vunpack.c.l.b16 %v475
        %v512 = vunpack.c.l.b16 %v476
        %v513 = vunpack.c.l.b16 %v477
        %v514 = vunpack.c.l.b16 %v478
        %v515 = vunpack.c.l.b16 %v479
        %v516 = vunpack.c.l.b16 %v480
        %v517 = vunpack.c.l.b16 %v481
        %v518 = vpack.c.b16 %v503, %v502
        %v519 = vpack.c.b16 %v505, %v504
        %v520 = vpack.c.b16 %v507, %v506
        %v521 = vpack.c.b16 %v509, %v508
        %v522 = vpack.c.b16 %v511, %v510
        %v523 = vpack.c.b16 %v513, %v512
        %v524 = vpack.c.b16 %v515, %v514
        %v525 = vpack.c.b16 %v517, %v516
        %534 = vmatprep.subr.bf16.mxu0 0
        %535 = vmatpush1.bf16.msra.mxu0 %v518
        %536 = vmatprep.subr.bf16.mxu0 0
        %537 = vmatpush1.bf16.msra.mxu0 %v519
        %538 = vmatprep.subr.bf16.mxu0 0
        %539 = vmatpush1.bf16.msra.mxu0 %v520
        %540 = vmatprep.subr.bf16.mxu0 0
        %541 = vmatpush1.bf16.msra.mxu0 %v521
        %542 = vmatprep.subr.bf16.mxu0 0
        %543 = vmatpush1.bf16.msra.mxu0 %v522
        %544 = vmatprep.subr.bf16.mxu0 0
        %545 = vmatpush1.bf16.msra.mxu0 %v523
        %546 = vmatprep.subr.bf16.mxu0 0
        %547 = vmatpush1.bf16.msra.mxu0 %v524
        %548 = vmatprep.subr.bf16.mxu0 0
        %549 = vmatpush1.bf16.msra.mxu0 %v525
        %550 = vmatprep.subr.bf16.mxu0 0
        %551 = vmatpush1.bf16.msra.mxu0 0
        %552 = vmatprep.subr.bf16.mxu0 0
        %553 = vmatpush1.bf16.msra.mxu0 0
        %554 = vmatprep.subr.bf16.mxu0 0
        %555 = vmatpush1.bf16.msra.mxu0 0
        %556 = vmatprep.subr.bf16.mxu0 0
        %557 = vmatpush1.bf16.msra.mxu0 0
        %558 = vmatprep.subr.bf16.mxu0 0
        %559 = vmatpush1.bf16.msra.mxu0 0
        %560 = vmatprep.subr.bf16.mxu0 0
        %561 = vmatpush1.bf16.msra.mxu0 0
        %562 = vmatprep.subr.bf16.mxu0 0
        %563 = vmatpush1.bf16.msra.mxu0 0
        %564 = vmatprep.subr.bf16.mxu0 0
        %565 = vmatpush1.bf16.msra.mxu0 0
        %566 = vmatprep.mubr.bf16.mxu0 0
        %567 = vmatmul.mubr.bf16.gmra.mrb[0].mxu0 %v465
        %v568 = vpop.f32.mrb[0].mxu0
        %v569 = vadd.f32 %v485, %v568
        %v570 = vpop.f32.mrb[0].mxu0
        %v571 = vpop.f32.mrb[0].mxu0
        %v572 = vadd.f32 %v485, %v571
        %v573 = vpop.f32.mrb[0].mxu0
        %574 = vdwg.mxu0
        %v575 = vlaneseq
        %v576 = vshrl.u32 %v575, 7
        %v577 = vsub.s32 0, %v576
        %v578 = vrot.slane %v312, %v577
        %v579 = vmul.f32 %v569, %v578
        %v580 = vmul.f32 %v572, %v578
        %v581 = vxor.u32 %v579, 2147483648
        %v582 = vxor.u32 %v580, 2147483648
        %v583 = vmul.f32 %v581, 1.442695
        %v584 = vpow.pop %v583
        %v585 = vmul.f32 %v582, 1.442695
        %v586 = vpow.pop %v585
        %v587 = vadd.f32 %v584, 1.0
        %v588 = vadd.f32 %v586, 1.0
        %v589 = vrcp.pop %v587
        %v590 = vmul.f32 1.0, %v589
        %v591 = vrcp.pop %v588
        %v592 = vmul.f32 1.0, %v591
        %v593 = vpack.c.bf16 %v592, %v590
        %v594 = vld [vmem:[#allocation9] sm:$0xf]
        %v595 = vld [vmem:[#allocation9 + $0x4] sm:$0xf]
        %v596 = vld [vmem:[#allocation9 + $0x8] sm:$0xf]
        %v597 = vld [vmem:[#allocation9 + $0xc] sm:$0xf]
        %v598 = vld [vmem:[#allocation9 + $0x10] sm:$0xf]
        %v599 = vld [vmem:[#allocation9 + $0x14] sm:$0xf]
        %v600 = vld [vmem:[#allocation9 + $0x18] sm:$0xf]
        %v601 = vld [vmem:[#allocation9 + $0x1c] sm:$0xf]
        %v602 = vld [vmem:[#allocation9 + $0x20] sm:$0xf]
        %v603 = vld [vmem:[#allocation9 + $0x24] sm:$0xf]
        %v604 = vld [vmem:[#allocation9 + $0x28] sm:$0xf]
        %v605 = vld [vmem:[#allocation9 + $0x2c] sm:$0xf]
        %v606 = vld [vmem:[#allocation9 + $0x30] sm:$0xf]
        %v607 = vld [vmem:[#allocation9 + $0x34] sm:$0xf]
        %v608 = vld [vmem:[#allocation9 + $0x38] sm:$0xf]
        %v609 = vld [vmem:[#allocation9 + $0x3c] sm:$0xf]
        %v610 = vlaneseq
        %v611 = vshrl.u32 %v610, 7
        %v612 = vsub.s32 0, %v611
        %v613 = vrot.slane %v313, %v612
        %v630 = vunpack.c.l.b16 %v594
        %v631 = vunpack.c.l.b16 %v595
        %v632 = vunpack.c.l.b16 %v596
        %v633 = vunpack.c.l.b16 %v597
        %v634 = vunpack.c.l.b16 %v598
        %v635 = vunpack.c.l.b16 %v599
        %v636 = vunpack.c.l.b16 %v600
        %v637 = vunpack.c.l.b16 %v601
        %v638 = vunpack.c.l.b16 %v602
        %v639 = vunpack.c.l.b16 %v603
        %v640 = vunpack.c.l.b16 %v604
        %v641 = vunpack.c.l.b16 %v605
        %v642 = vunpack.c.l.b16 %v606
        %v643 = vunpack.c.l.b16 %v607
        %v644 = vunpack.c.l.b16 %v608
        %v645 = vunpack.c.l.b16 %v609
        %v646 = vpack.c.b16 %v631, %v630
        %v647 = vpack.c.b16 %v633, %v632
        %v648 = vpack.c.b16 %v635, %v634
        %v649 = vpack.c.b16 %v637, %v636
        %v650 = vpack.c.b16 %v639, %v638
        %v651 = vpack.c.b16 %v641, %v640
        %v652 = vpack.c.b16 %v643, %v642
        %v653 = vpack.c.b16 %v645, %v644
        %662 = vmatprep.subr.bf16.mxu0 0
        %663 = vmatpush1.bf16.msra.mxu0 %v646
        %664 = vmatprep.subr.bf16.mxu0 0
        %665 = vmatpush1.bf16.msra.mxu0 %v647
        %666 = vmatprep.subr.bf16.mxu0 0
        %667 = vmatpush1.bf16.msra.mxu0 %v648
        %668 = vmatprep.subr.bf16.mxu0 0
        %669 = vmatpush1.bf16.msra.mxu0 %v649
        %670 = vmatprep.subr.bf16.mxu0 0
        %671 = vmatpush1.bf16.msra.mxu0 %v650
        %672 = vmatprep.subr.bf16.mxu0 0
        %673 = vmatpush1.bf16.msra.mxu0 %v651
        %674 = vmatprep.subr.bf16.mxu0 0
        %675 = vmatpush1.bf16.msra.mxu0 %v652
        %676 = vmatprep.subr.bf16.mxu0 0
        %677 = vmatpush1.bf16.msra.mxu0 %v653
        %678 = vmatprep.subr.bf16.mxu0 0
        %679 = vmatpush1.bf16.msra.mxu0 0
        %680 = vmatprep.subr.bf16.mxu0 0
        %681 = vmatpush1.bf16.msra.mxu0 0
        %682 = vmatprep.subr.bf16.mxu0 0
        %683 = vmatpush1.bf16.msra.mxu0 0
        %684 = vmatprep.subr.bf16.mxu0 0
        %685 = vmatpush1.bf16.msra.mxu0 0
        %686 = vmatprep.subr.bf16.mxu0 0
        %687 = vmatpush1.bf16.msra.mxu0 0
        %688 = vmatprep.subr.bf16.mxu0 0
        %689 = vmatpush1.bf16.msra.mxu0 0
        %690 = vmatprep.subr.bf16.mxu0 0
        %691 = vmatpush1.bf16.msra.mxu0 0
        %692 = vmatprep.subr.bf16.mxu0 0
        %693 = vmatpush1.bf16.msra.mxu0 0
        %694 = vmatprep.mubr.bf16.mxu0 0
        %695 = vmatmul.mubr.bf16.gmra.mrb[0].mxu0 %v593
        %v696 = vpop.f32.mrb[0].mxu0
        %v697 = vadd.f32 %v613, %v696
        %v698 = vpop.f32.mrb[0].mxu0
        %v699 = vpop.f32.mrb[0].mxu0
        %v700 = vadd.f32 %v613, %v699
        %v701 = vpop.f32.mrb[0].mxu0
        %702 = vdwg.mxu0
        %703 = vst [vmem:[%s304] sm:$0xff] %v697
        %704 = vst [vmem:[%s304 + $0x8] sm:$0xff] %v700
        %s705 = sand.u32 %s158, 1
        %s706 = scalar_lea.sflag [#allocation5], %s705
        %s707 = sand.u32 %s158, 1
        %s708 = smul.addr %s707, 16
        %s709 = scalar_lea.vmem [#allocation11], %s708
        // Predicated region
        $region61: #{tpu_custom_call.1} parent=39 // pred_check
          %p710 = pneg %p168
        $region62: #{tpu_custom_call.1} parent=39 // pred_check_branch
          %712 = sbr.rel (%p710) target = $region64
        $region63: #{tpu_custom_call.1} parent=39 // pred_region
          %s713 = smul.u32 2, %s28
          %s715 = ssub.s32 256, 256
          %716 = vsyncadd %s706, %s715
          %s717 = smul.addr %s29, 2
          %s718 = sadd.s32 %s713, %s717
          %s719 = smul.addr %s718, 128
          %s720 = scalar_lea.hbm %s5, %s719
          %s721 = sshll.u32 %s709, 4
          %s722 = int_to_ptr.vmem [resolvable:$true] %s721
          %727 = dma.vmem_to_hbm [thread:$0]  %s722, 256, %s720, %s706, 128, 128, 8
        $region64: #{tpu_custom_call.1} parent=39 // pred_fallthru
          _
      $region40: #{tpu_custom_call.1} parent=5 // pred_fallthru
        _
      %p728 = scmp.le.s32.totalorder 2, %s19
      // Predicated region
      $region65: #{tpu_custom_call.1} parent=5 // pred_check
        %p729 = pneg %p728
      $region66: #{tpu_custom_call.1} parent=5 // pred_check_branch
        %731 = sbr.rel (%p729) target = $region68
      $region67: #{tpu_custom_call.1} parent=5 // pred_region
        %s732 = ssub.s32 %s19, 2
        // Predicated region
        $region69: #{tpu_custom_call.1} parent=67 // pred_check
          %p733 = pneg %p174
        $region70: #{tpu_custom_call.1} parent=67 // pred_check_branch
          %735 = sbr.rel (%p733) target = $region72
        $region71: #{tpu_custom_call.1} parent=67 // pred_region
          %s736 = sand.u32 %s159, 1
          %s737 = scalar_lea.sflag [#allocation5], %s736
          %s738 = sand.u32 %s159, 1
          %s739 = smul.addr %s738, 16
          %s740 = scalar_lea.vmem [#allocation11], %s739
          %741 = dma.done %s737, 256
        $region72: #{tpu_custom_call.1} parent=67 // pred_fallthru
          _
      $region68: #{tpu_custom_call.1} parent=5 // pred_fallthru
        _
    $region6: #{tpu_custom_call.1} parent=1 // loop_footer
      %s23 = sadd.s32 1, %s19
    $region7: #{tpu_custom_call.1} parent=1 // loop_footer_branch
      %18 = sbr.rel target = $region3
    $region8: #{tpu_custom_call.1} parent=1 // loop_exit
      _
    %742 = vsyncpa [#allocation4], 1
    %s743 = scalar_lea.sflag [#allocation4], 1
    %744 = vsyncpa %s743, 1
    %745 = vsyncpa [#allocation7], 1
    %746 = vsyncpa [#allocation10], 1
    %747 = vsyncpa [#allocation5], 1
    %s748 = scalar_lea.sflag [#allocation5], 1
    %749 = vsyncpa %s748, 1

</llo_original>
